<compile_context>
chip_gen: v6e
topology: v6e:2x2x1
jax: 0.10.0
libtpu: 0.0.40
codegen_flags: <defaults>
</compile_context>

<pallas_src>
import functools
import math

import jax
import jax.numpy as jnp
from jax.experimental import pallas as pl
from jax.experimental.pallas import tpu as pltpu


def _layernorm_kernel(x_ref, g_ref, b_ref, o_ref, *, eps, features, k):
    """Normalizes k independent F-wide lane segments of a (TM, k*F) block."""
    gamma = g_ref[...].astype(jnp.float32)            # (1, F)
    beta = b_ref[...].astype(jnp.float32)             # (1, F)
    # Unbiased std (N-1), matching torch.std default.  features == 1 gives NaN
    # (same as torch) instead of crashing at trace time.
    inv_nm1 = (1.0 / float(features - 1)) if features > 1 else float("nan")

    for g in range(k):                                # static unroll, k*F == block lane width
        sl = slice(g * features, (g + 1) * features)
        x = x_ref[:, sl].astype(jnp.float32)          # (TM, F)
        mean = jnp.mean(x, axis=-1, keepdims=True)    # (TM, 1)
        diff = x - mean
        var = jnp.sum(diff * diff, axis=-1, keepdims=True) * inv_nm1
        std = jnp.sqrt(var)
        # One exact reciprocal per ROW (TM, 1), not a divide over (TM, F).
        inv = pl.reciprocal(std + eps, approx=False)  # (TM, 1)
        o_ref[:, sl] = ((diff * inv) * gamma + beta).astype(o_ref.dtype)


def _vmem_capacity_bytes():
    """Physical per-TensorCore VMEM; conservative fallback = 64 MiB (v7x)."""
    try:
        info = pltpu.get_tpu_info()
        for name in ("vmem_capacity_bytes", "vmem_bytes", "vmem_size_bytes"):
            v = getattr(info, name, None)
            if v:
                return int(v)
    except Exception:
        pass
    return 64 * 1024 * 1024


def _pick_row_tile(rows, width, itemsize, vmem_budget_bytes, sublane):
    """Largest sublane-aligned row tile whose pipelined working set fits the budget,
    capped so the grid keeps enough steps to pipeline / shard across TensorCores."""
    if rows <= sublane:
        # Full-extent block along rows is always legal, even if < sublane pack.
        return max(int(rows), 1)
    # Footprint per block row:
    #   2x double-buffered input + 2x double-buffered output at input itemsize
    #   + ~3 compiler-managed f32 intermediates (x upcast, diff, y pre-downcast).
    per_row = 4 * width * itemsize + 3 * width * 4
    tile = vmem_budget_bytes // max(per_row, 1)
    tile = min(tile, 1024)                  # diminishing returns past ~1k rows/step
    # Keep >= ~8 grid steps so DMA/compute overlap and dual-TC sharding stay alive.
    min_steps = 8
    steps_cap = -(-rows // min_steps)                       # cdiv(rows, 8)
    steps_cap = -(-steps_cap // sublane) * sublane          # round UP to sublane
    tile = min(tile, max(sublane, steps_cap))
    tile = min(tile, rows)
    tile = max(sublane, (tile // sublane) * sublane)        # sublane alignment
    return int(tile)


def layer_norm(x, gamma, beta, eps=1e-6, row_tile=None):
    """x: (..., F). Normalizes over the last axis, matching the torch LayerNorm above."""
    orig_shape = x.shape
    features = int(orig_shape[-1])
    rows = int(math.prod(orig_shape[:-1])) if len(orig_shape) > 1 else 1

    # Lane-dense repack: fold k rows into the last dim so blocks are 128-lane wide.
    k = 1
    if features < 128 and features >= 8 and 128 % features == 0:
        kk = 128 // features
        if rows % kk == 0:
            k = kk
    width = k * features
    rows_b = rows // k

    x2d = x.reshape(rows_b, width)          # pure metadata reshape (row-major)
    g2d = gamma.reshape(1, features)
    b2d = beta.reshape(1, features)

    itemsize = jnp.dtype(x.dtype).itemsize
    sublane = max(8, 32 // itemsize)        # 8 f32 / 16 bf16 / 32 int8,fp8

    # Budgets derived from the chip: 1/4 of physical VMEM for the pipelined
    # blocks (16 MiB v7x, 32 MiB v5e/v6e); scoped limit at 3/4 (48 / 64 MiB).
    vmem_cap = _vmem_capacity_bytes()
    pipeline_budget = min(vmem_cap // 4, 32 * 1024 * 1024)
    vmem_limit = min(vmem_cap * 3 // 4, 64 * 1024 * 1024)

    if row_tile is None:
        row_tile = _pick_row_tile(rows_b, width, itemsize, pipeline_budget, sublane)

    grid = (pl.cdiv(rows_b, row_tile),)     # partial last block handled by Pallas

    kernel = functools.partial(
        _layernorm_kernel, eps=float(eps), features=features, k=k
    )

    # Advisory cost: strictly HBM-bound (~2 passes over x), tiny transcendental count.
    cost = pl.CostEstimate(
        flops=8 * rows * features,
        transcendentals=2 * rows,
        bytes_accessed=2 * rows * features * itemsize
        + 2 * features * jnp.dtype(gamma.dtype).itemsize,
    )

    out2d = pl.pallas_call(
        kernel,
        out_shape=jax.ShapeDtypeStruct((rows_b, width), x.dtype),
        grid_spec=pltpu.PrefetchScalarGridSpec(
            num_scalar_prefetch=0,
            grid=grid,
            in_specs=[
                pl.BlockSpec((row_tile, width), lambda i: (i, 0)),
                pl.BlockSpec((1, features), lambda i: (0, 0)),
                pl.BlockSpec((1, features), lambda i: (0, 0)),
            ],
            out_specs=pl.BlockSpec((row_tile, width), lambda i: (i, 0)),
        ),
        compiler_params=pltpu.CompilerParams(
            dimension_semantics=("parallel",),
            vmem_limit_bytes=vmem_limit,
        ),
        cost_estimate=cost,
    )(x2d, g2d, b2d)

    return out2d.reshape(orig_shape)


if __name__ == "__main__":
    # Small shapes consistent with the module: (batch=2, seq=8, hidden=32)
    batch, seq, hidden = 2, 8, 32
    key = jax.random.PRNGKey(0)
    x = jax.random.normal(key, (batch, seq, hidden), dtype=jnp.float32)

    # Deterministic parameter init matching nn.Parameter(torch.ones/zeros(features))
    gamma = jnp.ones((hidden,), dtype=jnp.float32)
    beta = jnp.zeros((hidden,), dtype=jnp.float32)

    out = layer_norm(x, gamma, beta, eps=1e-6)
    out = jax.block_until_ready(out)

    # Sanity check against a pure-JAX reference of the same formula
    mean = jnp.mean(x, axis=-1, keepdims=True)
    std = jnp.sqrt(jnp.sum((x - mean) ** 2, axis=-1, keepdims=True) / (hidden - 1))
    ref = gamma * (x - mean) / (std + 1e-6) + beta
    assert jnp.allclose(out, ref, atol=1e-5, rtol=1e-5), "mismatch vs reference"

    print("KERNEL_OK")
</pallas_src>

<mosaic_0001>
module attributes {stable_mosaic.version = 11 : i64} {
  func.func @_layernorm_kernel(%arg0: i32, %arg1: memref<4x128xf32, #tpu.memory_space<vmem>>, %arg2: memref<1x32xf32, #tpu.memory_space<vmem>>, %arg3: memref<1x32xf32, #tpu.memory_space<vmem>>, %arg4: memref<4x128xf32, #tpu.memory_space<vmem>>) attributes {dimension_semantics = [#tpu.dimension_semantics<parallel>], iteration_bounds = array<i64: 1>, scalar_prefetch = 0 : i64, scratch_operands = 0 : i64, tpu.core_type = #tpu.core_type<tc>, window_params = [{transform_indices = @transform_0, window_bounds = array<i64: 4, 128>}, {pipeline_mode = #tpu.pipeline_mode<synchronous>, transform_indices = @transform_1, window_bounds = array<i64: 1, 32>}, {pipeline_mode = #tpu.pipeline_mode<synchronous>, transform_indices = @transform_2, window_bounds = array<i64: 1, 32>}, {transform_indices = @transform_3, window_bounds = array<i64: 4, 128>}]} {
    %c0 = arith.constant 0 : index
    %c0_0 = arith.constant 0 : index
    %0 = vector.load %arg2[%c0, %c0_0] : memref<1x32xf32, #tpu.memory_space<vmem>>, vector<1x32xf32>
    %c0_1 = arith.constant 0 : index
    %c0_2 = arith.constant 0 : index
    %1 = vector.load %arg3[%c0_1, %c0_2] : memref<1x32xf32, #tpu.memory_space<vmem>>, vector<1x32xf32>
    %c0_3 = arith.constant 0 : index
    %c0_4 = arith.constant 0 : index
    %2 = vector.load %arg1[%c0_3, %c0_4] : memref<4x128xf32, #tpu.memory_space<vmem>>, vector<4x32xf32>
    %cst = arith.constant dense<0.000000e+00> : vector<4xf32>
    %3 = vector.multi_reduction <add>, %2, %cst [1] : vector<4x32xf32> to vector<4xf32>
    %4 = vector.shape_cast %3 : vector<4xf32> to vector<4x1xf32>
    %cst_5 = arith.constant 3.200000e+01 : f32
    %5 = vector.broadcast %cst_5 : f32 to vector<4x1xf32>
    %6 = arith.divf %4, %5 : vector<4x1xf32>
    %7 = vector.broadcast %6 : vector<4x1xf32> to vector<4x32xf32>
    %8 = arith.subf %2, %7 : vector<4x32xf32>
    %9 = arith.mulf %8, %8 : vector<4x32xf32>
    %cst_6 = arith.constant dense<0.000000e+00> : vector<4xf32>
    %10 = vector.multi_reduction <add>, %9, %cst_6 [1] : vector<4x32xf32> to vector<4xf32>
    %11 = vector.shape_cast %10 : vector<4xf32> to vector<4x1xf32>
    %cst_7 = arith.constant 0.0322580636 : f32
    %12 = vector.broadcast %cst_7 : f32 to vector<4x1xf32>
    %13 = arith.mulf %11, %12 : vector<4x1xf32>
    %14 = math.sqrt %13 : vector<4x1xf32>
    %cst_8 = arith.constant 9.99999997E-7 : f32
    %15 = vector.broadcast %cst_8 : f32 to vector<4x1xf32>
    %16 = arith.addf %14, %15 : vector<4x1xf32>
    %17 = tpu.reciprocal %16 : vector<4x1xf32> -> vector<4x1xf32>
    %18 = vector.broadcast %17 : vector<4x1xf32> to vector<4x32xf32>
    %19 = arith.mulf %8, %18 : vector<4x32xf32>
    %20 = vector.broadcast %0 : vector<1x32xf32> to vector<4x32xf32>
    %21 = arith.mulf %19, %20 : vector<4x32xf32>
    %22 = vector.broadcast %1 : vector<1x32xf32> to vector<4x32xf32>
    %23 = arith.addf %21, %22 : vector<4x32xf32>
    %c0_9 = arith.constant 0 : index
    %c0_10 = arith.constant 0 : index
    %24 = vector.load %arg4[%c0_9, %c0_10] : memref<4x128xf32, #tpu.memory_space<vmem>>, vector<4x32xf32>
    tpu.vector_store %arg4[%c0_9, %c0_10], %23 {strides = array<i32>} : memref<4x128xf32, #tpu.memory_space<vmem>>, vector<4x32xf32>,
    %c0_11 = arith.constant 0 : index
    %c32 = arith.constant 32 : index
    %25 = vector.load %arg1[%c0_11, %c32] : memref<4x128xf32, #tpu.memory_space<vmem>>, vector<4x32xf32>
    %cst_12 = arith.constant dense<0.000000e+00> : vector<4xf32>
    %26 = vector.multi_reduction <add>, %25, %cst_12 [1] : vector<4x32xf32> to vector<4xf32>
    %27 = vector.shape_cast %26 : vector<4xf32> to vector<4x1xf32>
    %cst_13 = arith.constant 3.200000e+01 : f32
    %28 = vector.broadcast %cst_13 : f32 to vector<4x1xf32>
    %29 = arith.divf %27, %28 : vector<4x1xf32>
    %30 = vector.broadcast %29 : vector<4x1xf32> to vector<4x32xf32>
    %31 = arith.subf %25, %30 : vector<4x32xf32>
    %32 = arith.mulf %31, %31 : vector<4x32xf32>
    %cst_14 = arith.constant dense<0.000000e+00> : vector<4xf32>
    %33 = vector.multi_reduction <add>, %32, %cst_14 [1] : vector<4x32xf32> to vector<4xf32>
    %34 = vector.shape_cast %33 : vector<4xf32> to vector<4x1xf32>
    %cst_15 = arith.constant 0.0322580636 : f32
    %35 = vector.broadcast %cst_15 : f32 to vector<4x1xf32>
    %36 = arith.mulf %34, %35 : vector<4x1xf32>
    %37 = math.sqrt %36 : vector<4x1xf32>
    %cst_16 = arith.constant 9.99999997E-7 : f32
    %38 = vector.broadcast %cst_16 : f32 to vector<4x1xf32>
    %39 = arith.addf %37, %38 : vector<4x1xf32>
    %40 = tpu.reciprocal %39 : vector<4x1xf32> -> vector<4x1xf32>
    %41 = vector.broadcast %40 : vector<4x1xf32> to vector<4x32xf32>
    %42 = arith.mulf %31, %41 : vector<4x32xf32>
    %43 = vector.broadcast %0 : vector<1x32xf32> to vector<4x32xf32>
    %44 = arith.mulf %42, %43 : vector<4x32xf32>
    %45 = vector.broadcast %1 : vector<1x32xf32> to vector<4x32xf32>
    %46 = arith.addf %44, %45 : vector<4x32xf32>
    %c0_17 = arith.constant 0 : index
    %c32_18 = arith.constant 32 : index
    %47 = vector.load %arg4[%c0_17, %c32_18] : memref<4x128xf32, #tpu.memory_space<vmem>>, vector<4x32xf32>
    tpu.vector_store %arg4[%c0_17, %c32_18], %46 {strides = array<i32>} : memref<4x128xf32, #tpu.memory_space<vmem>>, vector<4x32xf32>,
    %c0_19 = arith.constant 0 : index
    %c64 = arith.constant 64 : index
    %48 = vector.load %arg1[%c0_19, %c64] : memref<4x128xf32, #tpu.memory_space<vmem>>, vector<4x32xf32>
    %cst_20 = arith.constant dense<0.000000e+00> : vector<4xf32>
    %49 = vector.multi_reduction <add>, %48, %cst_20 [1] : vector<4x32xf32> to vector<4xf32>
    %50 = vector.shape_cast %49 : vector<4xf32> to vector<4x1xf32>
    %cst_21 = arith.constant 3.200000e+01 : f32
    %51 = vector.broadcast %cst_21 : f32 to vector<4x1xf32>
    %52 = arith.divf %50, %51 : vector<4x1xf32>
    %53 = vector.broadcast %52 : vector<4x1xf32> to vector<4x32xf32>
    %54 = arith.subf %48, %53 : vector<4x32xf32>
    %55 = arith.mulf %54, %54 : vector<4x32xf32>
    %cst_22 = arith.constant dense<0.000000e+00> : vector<4xf32>
    %56 = vector.multi_reduction <add>, %55, %cst_22 [1] : vector<4x32xf32> to vector<4xf32>
    %57 = vector.shape_cast %56 : vector<4xf32> to vector<4x1xf32>
    %cst_23 = arith.constant 0.0322580636 : f32
    %58 = vector.broadcast %cst_23 : f32 to vector<4x1xf32>
    %59 = arith.mulf %57, %58 : vector<4x1xf32>
    %60 = math.sqrt %59 : vector<4x1xf32>
    %cst_24 = arith.constant 9.99999997E-7 : f32
    %61 = vector.broadcast %cst_24 : f32 to vector<4x1xf32>
    %62 = arith.addf %60, %61 : vector<4x1xf32>
    %63 = tpu.reciprocal %62 : vector<4x1xf32> -> vector<4x1xf32>
    %64 = vector.broadcast %63 : vector<4x1xf32> to vector<4x32xf32>
    %65 = arith.mulf %54, %64 : vector<4x32xf32>
    %66 = vector.broadcast %0 : vector<1x32xf32> to vector<4x32xf32>
    %67 = arith.mulf %65, %66 : vector<4x32xf32>
    %68 = vector.broadcast %1 : vector<1x32xf32> to vector<4x32xf32>
    %69 = arith.addf %67, %68 : vector<4x32xf32>
    %c0_25 = arith.constant 0 : index
    %c64_26 = arith.constant 64 : index
    %70 = vector.load %arg4[%c0_25, %c64_26] : memref<4x128xf32, #tpu.memory_space<vmem>>, vector<4x32xf32>
    tpu.vector_store %arg4[%c0_25, %c64_26], %69 {strides = array<i32>} : memref<4x128xf32, #tpu.memory_space<vmem>>, vector<4x32xf32>,
    %c0_27 = arith.constant 0 : index
    %c96 = arith.constant 96 : index
    %71 = vector.load %arg1[%c0_27, %c96] : memref<4x128xf32, #tpu.memory_space<vmem>>, vector<4x32xf32>
    %cst_28 = arith.constant dense<0.000000e+00> : vector<4xf32>
    %72 = vector.multi_reduction <add>, %71, %cst_28 [1] : vector<4x32xf32> to vector<4xf32>
    %73 = vector.shape_cast %72 : vector<4xf32> to vector<4x1xf32>
    %cst_29 = arith.constant 3.200000e+01 : f32
    %74 = vector.broadcast %cst_29 : f32 to vector<4x1xf32>
    %75 = arith.divf %73, %74 : vector<4x1xf32>
    %76 = vector.broadcast %75 : vector<4x1xf32> to vector<4x32xf32>
    %77 = arith.subf %71, %76 : vector<4x32xf32>
    %78 = arith.mulf %77, %77 : vector<4x32xf32>
    %cst_30 = arith.constant dense<0.000000e+00> : vector<4xf32>
    %79 = vector.multi_reduction <add>, %78, %cst_30 [1] : vector<4x32xf32> to vector<4xf32>
    %80 = vector.shape_cast %79 : vector<4xf32> to vector<4x1xf32>
    %cst_31 = arith.constant 0.0322580636 : f32
    %81 = vector.broadcast %cst_31 : f32 to vector<4x1xf32>
    %82 = arith.mulf %80, %81 : vector<4x1xf32>
    %83 = math.sqrt %82 : vector<4x1xf32>
    %cst_32 = arith.constant 9.99999997E-7 : f32
    %84 = vector.broadcast %cst_32 : f32 to vector<4x1xf32>
    %85 = arith.addf %83, %84 : vector<4x1xf32>
    %86 = tpu.reciprocal %85 : vector<4x1xf32> -> vector<4x1xf32>
    %87 = vector.broadcast %86 : vector<4x1xf32> to vector<4x32xf32>
    %88 = arith.mulf %77, %87 : vector<4x32xf32>
    %89 = vector.broadcast %0 : vector<1x32xf32> to vector<4x32xf32>
    %90 = arith.mulf %88, %89 : vector<4x32xf32>
    %91 = vector.broadcast %1 : vector<1x32xf32> to vector<4x32xf32>
    %92 = arith.addf %90, %91 : vector<4x32xf32>
    %c0_33 = arith.constant 0 : index
    %c96_34 = arith.constant 96 : index
    %93 = vector.load %arg4[%c0_33, %c96_34] : memref<4x128xf32, #tpu.memory_space<vmem>>, vector<4x32xf32>
    tpu.vector_store %arg4[%c0_33, %c96_34], %92 {strides = array<i32>} : memref<4x128xf32, #tpu.memory_space<vmem>>, vector<4x32xf32>,
    return
  }
  func.func @transform_0(%arg0: i32) -> (i32, i32) {
    %c0_i32 = arith.constant 0 : i32
    %c0_i32_0 = arith.constant 0 : i32
    return %arg0, %c0_i32 : i32, i32
  }
  func.func @transform_1(%arg0: i32) -> (i32, i32) {
    %c0_i32 = arith.constant 0 : i32
    %c0_i32_0 = arith.constant 0 : i32
    %c0_i32_1 = arith.constant 0 : i32
    return %c0_i32, %c0_i32_0 : i32, i32
  }
  func.func @transform_2(%arg0: i32) -> (i32, i32) {
    %c0_i32 = arith.constant 0 : i32
    %c0_i32_0 = arith.constant 0 : i32
    %c0_i32_1 = arith.constant 0 : i32
    return %c0_i32, %c0_i32_0 : i32, i32
  }
  func.func @transform_3(%arg0: i32) -> (i32, i32) {
    %c0_i32 = arith.constant 0 : i32
    %c0_i32_0 = arith.constant 0 : i32
    return %arg0, %c0_i32 : i32, i32
  }
}

</mosaic_0001>

<llo_original>
// kernel: tpu_custom_call.1
$region0: #{tpu_custom_call.1}
  #allocation0 [shape = 'u32[]', space=smem, size = 0x4, offset = 0x4, fixed_abs, tag = 'smem constant byte address 0x4 - core index']
  #allocation1 [shape = 'u32[144,128]{1,0:T(1,128)}', space=vmem, size = 0x12000, scoped, tag = 'internal scratch']
  %s0 = inlined_call_operand.hbm [shape: f32[4,128], index: 0, kind: input, shape index: {}]
  %s1 = inlined_call_operand.vmem [shape: f32[1,32], index: 1, kind: input, shape index: {}]
  %s2 = inlined_call_operand.vmem [shape: f32[1,32], index: 2, kind: input, shape index: {}]
  %s3 = inlined_call_operand.hbm [shape: f32[4,128], index: 3, kind: output, shape index: {}]
  %s4 = sld [smem:[#allocation0]]
  $region26: #{tpu_custom_call.1} parent=0
    _
  %s6 = ssub.s32 1, %s4
  %s7 = scalar_select 0, %s6, %s4
  $region1: #{tpu_custom_call.1} parent=0
    #allocation2 [shape = 'u8[2048]{0}', space=vmem, size = 0x800, scoped, tag = 'input window, operand 0, single buffered']
    #allocation3 [shape = 's32[1]{0}', space=sflag, size = 0x4, scoped, tag = 'scoped memory for tpu_custom_call.1']
    #allocation4 [shape = 's32[1]{0}', space=sflag, size = 0x4, scoped, tag = 'scoped memory for tpu_custom_call.1']
    #allocation5 [shape = 'u8[2048]{0}', space=vmem, size = 0x800, scoped, tag = 'output window, operand 0, single buffered']
    %8 = vsyncpa [#allocation3], 0
    %9 = vsyncpa [#allocation4], 0
    // Predicated region
    $region2: #{tpu_custom_call.1} parent=1 // pred_check
      _
    $region3: #{tpu_custom_call.1} parent=1 // pred_check_branch
      %11 = sbr.rel (0) target = $region5
    $region4: #{tpu_custom_call.1} parent=1 // pred_region
      %s13 = ssub.s32 64, 64
      %14 = vsyncadd [#allocation3], %s13
      %s16 = sshll.u32 [#allocation2], 4
      %s17 = int_to_ptr.vmem [resolvable:$true] %s16
      %19 = dma.hbm_to_vmem [thread:$0]  %s0, 64, %s17, [#allocation3]
    $region5: #{tpu_custom_call.1} parent=1 // pred_fallthru
      _
    // Predicated region
    $region6: #{tpu_custom_call.1} parent=1 // pred_check
      _
    $region7: #{tpu_custom_call.1} parent=1 // pred_check_branch
      %21 = sbr.rel (0) target = $region9
    $region8: #{tpu_custom_call.1} parent=1 // pred_region
      _
    $region9: #{tpu_custom_call.1} parent=1 // pred_fallthru
      _
    // Predicated region
    $region10: #{tpu_custom_call.1} parent=1 // pred_check
      _
    $region11: #{tpu_custom_call.1} parent=1 // pred_check_branch
      %23 = sbr.rel (0) target = $region13
    $region12: #{tpu_custom_call.1} parent=1 // pred_region
      _
    $region13: #{tpu_custom_call.1} parent=1 // pred_fallthru
      _
    // Predicated region
    $region14: #{tpu_custom_call.1} parent=1 // pred_check
      _
    $region15: #{tpu_custom_call.1} parent=1 // pred_check_branch
      %25 = sbr.rel (0) target = $region17
    $region16: #{tpu_custom_call.1} parent=1 // pred_region
      %26 = dma.done [#allocation3], 64
    $region17: #{tpu_custom_call.1} parent=1 // pred_fallthru
      _
    %v27 = vld [vmem:[%s1] sm:$0x1]
    %v28 = vld [vmem:[%s2] sm:$0x1]
    %v29 = vld [vmem:[#allocation2] sm:$0xf]
    %vm30 = vcmask 257024
    %v31 = vsel %vm30, %v29, 0.0
    %32 = vadd.xlane.f32.xlu0 %v31
    %v33 = vpop.xlane.xlu0 %32
    %v34 = vrcp.pop 32.0
    %v35 = vmul.f32 %v33, %v34
    %v36 = vsub.f32 %v29, %v35
    %v37 = vmul.f32 %v36, %v36
    %v38 = vsel %vm30, %v37, 0.0
    %39 = vadd.xlane.f32.xlu0 %v38
    %v40 = vpop.xlane.xlu0 %39
    %v41 = vmul.f32 %v40, 0.032258064
    %v42 = vrsqrt.pop %v41
    %v43 = vmul.f32 %v41, %v42
    %vm44 = vcmp.eq.f32.partialorder %v41, inf
    %v45 = vsel %vm44, %v41, %v43
    %vm46 = vcmp.eq.f32.partialorder %v41, 0.0
    %v47 = vand.u32 %v41, 2147483648
    %v48 = vsel %vm46, %v47, %v45
    %v49 = vadd.f32 %v48, 1e-06
    %v50 = vrcp.pop %v49
    %v51 = vmul.f32 %v36, %v50
    %v53 = vlaneseq
    %v54 = vshrl.u32 %v53, 7
    %v55 = vsub.s32 0, %v54
    %v56 = vrot.slane %v27, %v55
    %v58 = vmul.f32 %v51, %v56
    %v60 = vlaneseq
    %v61 = vshrl.u32 %v60, 7
    %v62 = vsub.s32 0, %v61
    %v63 = vrot.slane %v28, %v62
    %v65 = vadd.f32 %v58, %v63
    %66 = vst.msk [vmem:[#allocation5] sm:$0xf] %vm30, %v65
    %v67 = vld [vmem:[#allocation2] sm:$0xf]
    %69 = vrot.lane.b32.xlu0 %v67, 96
    %v70 = vpop.permute.xlu0 %69
    %v72 = vsel %vm30, %v70, 0.0
    %73 = vadd.xlane.f32.xlu0 %v72
    %v74 = vpop.xlane.xlu0 %73
    %v75 = vmul.f32 %v74, %v34
    %v76 = vsub.f32 %v67, %v75
    %v77 = vmul.f32 %v76, %v76
    %79 = vrot.lane.b32.xlu0 %v77, 96
    %v80 = vpop.permute.xlu0 %79
    %v82 = vsel %vm30, %v80, 0.0
    %83 = vadd.xlane.f32.xlu0 %v82
    %v84 = vpop.xlane.xlu0 %83
    %v85 = vmul.f32 %v84, 0.032258064
    %v86 = vrsqrt.pop %v85
    %v87 = vmul.f32 %v85, %v86
    %vm88 = vcmp.eq.f32.partialorder %v85, inf
    %v89 = vsel %vm88, %v85, %v87
    %vm90 = vcmp.eq.f32.partialorder %v85, 0.0
    %v91 = vand.u32 %v85, 2147483648
    %v92 = vsel %vm90, %v91, %v89
    %v93 = vadd.f32 %v92, 1e-06
    %v94 = vrcp.pop %v93
    %v95 = vmul.f32 %v76, %v94
    %96 = vrot.lane.b32.xlu0 %v56, 32
    %v97 = vpop.permute.xlu0 %96
    %v99 = vmul.f32 %v95, %v97
    %100 = vrot.lane.b32.xlu0 %v63, 32
    %v101 = vpop.permute.xlu0 %100
    %v103 = vadd.f32 %v99, %v101
    %vm104 = vcmask 519424
    %105 = vst.msk [vmem:[#allocation5] sm:$0xf] %vm104, %v103
    %v106 = vld [vmem:[#allocation2] sm:$0xf]
    %108 = vrot.lane.b32.xlu0 %v106, 64
    %v109 = vpop.permute.xlu0 %108
    %v111 = vsel %vm30, %v109, 0.0
    %112 = vadd.xlane.f32.xlu0 %v111
    %v113 = vpop.xlane.xlu0 %112
    %v114 = vmul.f32 %v113, %v34
    %v115 = vsub.f32 %v106, %v114
    %v116 = vmul.f32 %v115, %v115
    %118 = vrot.lane.b32.xlu0 %v116, 64
    %v119 = vpop.permute.xlu0 %118
    %v121 = vsel %vm30, %v119, 0.0
    %122 = vadd.xlane.f32.xlu0 %v121
    %v123 = vpop.xlane.xlu0 %122
    %v124 = vmul.f32 %v123, 0.032258064
    %v125 = vrsqrt.pop %v124
    %v126 = vmul.f32 %v124, %v125
    %vm127 = vcmp.eq.f32.partialorder %v124, inf
    %v128 = vsel %vm127, %v124, %v126
    %vm129 = vcmp.eq.f32.partialorder %v124, 0.0
    %v130 = vand.u32 %v124, 2147483648
    %v131 = vsel %vm129, %v130, %v128
    %v132 = vadd.f32 %v131, 1e-06
    %v133 = vrcp.pop %v132
    %v134 = vmul.f32 %v115, %v133
    %135 = vrot.lane.b32.xlu0 %v56, 64
    %v136 = vpop.permute.xlu0 %135
    %v138 = vmul.f32 %v134, %v136
    %139 = vrot.lane.b32.xlu0 %v63, 64
    %v140 = vpop.permute.xlu0 %139
    %v142 = vadd.f32 %v138, %v140
    %vm143 = vcmask 781824
    %144 = vst.msk [vmem:[#allocation5] sm:$0xf] %vm143, %v142
    %v145 = vld [vmem:[#allocation2] sm:$0xf]
    %147 = vrot.lane.b32.xlu0 %v145, 32
    %v148 = vpop.permute.xlu0 %147
    %v150 = vsel %vm30, %v148, 0.0
    %151 = vadd.xlane.f32.xlu0 %v150
    %v152 = vpop.xlane.xlu0 %151
    %v153 = vmul.f32 %v152, %v34
    %v154 = vsub.f32 %v145, %v153
    %v155 = vmul.f32 %v154, %v154
    %157 = vrot.lane.b32.xlu0 %v155, 32
    %v158 = vpop.permute.xlu0 %157
    %v160 = vsel %vm30, %v158, 0.0
    %161 = vadd.xlane.f32.xlu0 %v160
    %v162 = vpop.xlane.xlu0 %161
    %v163 = vmul.f32 %v162, 0.032258064
    %v164 = vrsqrt.pop %v163
    %v165 = vmul.f32 %v163, %v164
    %vm166 = vcmp.eq.f32.partialorder %v163, inf
    %v167 = vsel %vm166, %v163, %v165
    %vm168 = vcmp.eq.f32.partialorder %v163, 0.0
    %v169 = vand.u32 %v163, 2147483648
    %v170 = vsel %vm168, %v169, %v167
    %v171 = vadd.f32 %v170, 1e-06
    %v172 = vrcp.pop %v171
    %v173 = vmul.f32 %v154, %v172
    %174 = vrot.lane.b32.xlu0 %v56, 96
    %v175 = vpop.permute.xlu0 %174
    %v177 = vmul.f32 %v173, %v175
    %178 = vrot.lane.b32.xlu0 %v63, 96
    %v179 = vpop.permute.xlu0 %178
    %v181 = vadd.f32 %v177, %v179
    %vm182 = vcmask 1044224
    %183 = vst.msk [vmem:[#allocation5] sm:$0xf] %vm182, %v181
    // Predicated region
    $region18: #{tpu_custom_call.1} parent=1 // pred_check
      _
    $region19: #{tpu_custom_call.1} parent=1 // pred_check_branch
      %185 = sbr.rel (0) target = $region21
    $region20: #{tpu_custom_call.1} parent=1 // pred_region
      %s187 = ssub.s32 64, 64
      %188 = vsyncadd [#allocation4], %s187
      %s190 = sshll.u32 [#allocation5], 4
      %s191 = int_to_ptr.vmem [resolvable:$true] %s190
      %193 = dma.vmem_to_hbm [thread:$0]  %s191, 64, %s3, [#allocation4]
    $region21: #{tpu_custom_call.1} parent=1 // pred_fallthru
      _
    // Predicated region
    $region22: #{tpu_custom_call.1} parent=1 // pred_check
      _
    $region23: #{tpu_custom_call.1} parent=1 // pred_check_branch
      %195 = sbr.rel (0) target = $region25
    $region24: #{tpu_custom_call.1} parent=1 // pred_region
      %196 = dma.done [#allocation4], 64
    $region25: #{tpu_custom_call.1} parent=1 // pred_fallthru
      _
    %197 = vsyncpa [#allocation3], 1
    %198 = vsyncpa [#allocation4], 1

</llo_original>
